<compile_context>
chip_gen: v6e
topology: v6e:2x2x1
jax: 0.10.0
libtpu: 0.0.40
codegen_flags: <defaults>
</compile_context>

<pallas_src>
import jax
import jax.numpy as jnp
from jax.experimental import pallas as pl
from jax.experimental.pallas import tpu as pltpu


def _round_up(x, m):
    return (x + m - 1) // m * m


def _vmem_limit_bytes():
    try:
        kind = jax.devices()[0].device_kind.lower()
    except Exception:
        kind = ""
    if "v7" in kind:
        return 48 * 1024 * 1024   # v7x: 64 MiB physical VMEM per TensorCore
    return 64 * 1024 * 1024       # v4/v5e/v6e: 128 MiB physical VMEM


def _make_additive_attention_kernel(tile_q, tile_k, n_hiddens, with_attn, feature_dtype):
    def kernel(vlen_ref, q_ref, kt_ref, v_ref, wq_ref, wkt_ref, wv_ref, *refs):
        if with_attn:
            out_ref, attn_ref, qh_sc, m_sc, l_sc = refs
        else:
            out_ref, qh_sc, m_sc, l_sc = refs
            attn_ref = None

        b = pl.program_id(0)
        ki = pl.program_id(2)
        nk = pl.num_programs(2)

        # ---- once per (batch, q-tile): hoisted query projection + accumulator init ----
        @pl.when(ki == 0)
        def _init():
            qh_sc[...] = jnp.dot(q_ref[...], wq_ref[...],
                                 preferred_element_type=jnp.float32)      # (TQ, H)
            m_sc[...] = jnp.full_like(m_sc, -jnp.inf)
            l_sc[...] = jnp.zeros_like(l_sc)
            out_ref[...] = jnp.zeros_like(out_ref)
            if with_attn:
                attn_ref[...] = jnp.zeros_like(attn_ref)

        vlen = vlen_ref[b]                                   # per-batch valid length (SMEM)
        k_start = pl.multiple_of(ki * tile_k, tile_k)

        # ---- skip K tiles that are entirely past valid_len (saves all the tanh work) ----
        @pl.when(jnp.logical_or(k_start < vlen, ki == 0))
        def _compute():
            # key projection laid out (H, TK): H on sublanes, K on lanes (no transposes)
            kht = jnp.dot(wkt_ref[...], kt_ref[...],
                          preferred_element_type=jnp.float32)             # (H, TK)
            qh = qh_sc[...]                                               # (TQ, H)

            # additive features: (TQ, H, TK) -> full lane occupancy for the EUP tanh
            feat = jnp.tanh(qh.astype(feature_dtype)[:, :, None]
                            + kht.astype(feature_dtype)[None, :, :])
            # score = sum_h w_v[h] * feat[:, h, :]  (sublane reduce over H, f32 accumulate)
            scores = jnp.sum(feat * wv_ref[...].reshape(1, n_hiddens, 1), axis=1)  # (TQ, TK)

            # masking (d2l sentinel -1e6), key position from the lane iota
            kpos = k_start + jax.lax.broadcasted_iota(jnp.int32, (tile_q, tile_k), 1)
            masked = jnp.where(kpos < vlen, scores, jnp.float32(-1e6))

            # online-softmax update (flash-style)
            m_prev = m_sc[...]
            m_new = jnp.maximum(m_prev, jnp.max(masked, axis=-1, keepdims=True))
            alpha = jnp.exp(m_prev - m_new)                               # (TQ, 1)
            p = jnp.exp(masked - m_new)                                   # (TQ, TK)
            l_sc[...] = alpha * l_sc[...] + jnp.sum(p, axis=-1, keepdims=True)
            out_ref[...] = alpha * out_ref[...] + jnp.dot(
                p, v_ref[...], preferred_element_type=jnp.float32)
            m_sc[...] = m_new

            if with_attn:
                # keep the whole (TQ, Kpad) attention row resident so previously written
                # tiles can be rescaled by alpha and normalized once at the end.
                @pl.when(ki > 0)
                def _rescale():
                    attn_ref[...] = attn_ref[...] * alpha
                attn_ref[:, pl.ds(k_start, tile_k)] = p

        # ---- finalize on the last K tile ----
        @pl.when(ki == nk - 1)
        def _finalize():
            inv_l = pl.reciprocal(l_sc[...], approx=True)                 # EUP vrcp
            out_ref[...] = out_ref[...] * inv_l
            if with_attn:
                attn_ref[...] = attn_ref[...] * inv_l

    return kernel


def additive_attention(queries, keys, values, valid_lens, w_q, w_k, w_v, *,
                       tile_q=None, tile_k=None,
                       feature_dtype=jnp.float32,
                       return_attention_weights=False):
    """AdditiveAttention forward.

    queries (B,Q,Dq), keys (B,K,Dk), values (B,K,Dv)  -- float32
    valid_lens (B,) or (B,1) int (None => no masking)
    w_q (Dq,H), w_k (Dk,H), w_v (H,1)  -- stored transposed vs. torch nn.Linear.weight,
    so projections are plain `x @ W`.
    feature_dtype: jnp.bfloat16 speeds up the tanh datapath on v6e/v7x (keep f32 on v5e).
    """
    B, Q, Dq = queries.shape
    _, K, Dk = keys.shape
    Dv = values.shape[-1]
    H = w_q.shape[-1]

    # ---- tile selection: tile_q multiple of 8 (sublanes), tile_k multiple of 128 (lanes);
    #      cap the (tile_q, H, tile_k) f32 feature slab so it fits comfortably even in
    #      v7x's smaller VMEM. ----
    if tile_q is None:
        tile_q = min(128, _round_up(Q, 8))
    tile_q = _round_up(tile_q, 8)
    if tile_k is None:
        tile_k = min(512, _round_up(K, 128))
        feat_budget = 4 * 1024 * 1024
        tile_k = min(tile_k, max(128, (feat_budget // (tile_q * H * 4)) // 128 * 128))
    tile_k = _round_up(tile_k, 128)

    Qp = _round_up(Q, tile_q)
    Kp = _round_up(K, tile_k)

    # ---- pad to tile multiples; transpose keys so K sits on lanes (lane-dense DMA and
    #      the (H, tile_k) feature layout), pre-transpose w_k accordingly. ----
    qp = jnp.pad(queries, ((0, 0), (0, Qp - Q), (0, 0)))
    kp = jnp.pad(keys, ((0, 0), (0, Kp - K), (0, 0)))
    vp = jnp.pad(values, ((0, 0), (0, Kp - K), (0, 0)))
    keys_t = jnp.swapaxes(kp, 1, 2)          # (B, Dk, Kp)
    w_k_t = w_k.T                            # (H, Dk)

    if valid_lens is None:
        vlen = jnp.full((B,), K, dtype=jnp.int32)
    else:
        vlen = jnp.minimum(valid_lens.reshape(B).astype(jnp.int32), K)

    grid = (B, Qp // tile_q, Kp // tile_k)
    kernel = _make_additive_attention_kernel(tile_q, tile_k, H,
                                             return_attention_weights, feature_dtype)

    out_shape = [jax.ShapeDtypeStruct((B, Qp, Dv), jnp.float32)]
    out_specs = [pl.BlockSpec((None, tile_q, Dv), lambda b, qi, ki, vl: (b, qi, 0))]
    if return_attention_weights:
        out_shape.append(jax.ShapeDtypeStruct((B, Qp, Kp), jnp.float32))
        out_specs.append(pl.BlockSpec((None, tile_q, Kp), lambda b, qi, ki, vl: (b, qi, 0)))

    grid_spec = pltpu.PrefetchScalarGridSpec(
        num_scalar_prefetch=1,                # valid_lens -> SMEM
        grid=grid,
        in_specs=[
            pl.BlockSpec((None, tile_q, Dq), lambda b, qi, ki, vl: (b, qi, 0)),   # queries
            pl.BlockSpec((None, Dk, tile_k), lambda b, qi, ki, vl: (b, 0, ki)),   # keys^T
            pl.BlockSpec((None, tile_k, Dv), lambda b, qi, ki, vl: (b, ki, 0)),   # values
            pl.BlockSpec((Dq, H), lambda b, qi, ki, vl: (0, 0)),                  # W_q (resident)
            pl.BlockSpec((H, Dk), lambda b, qi, ki, vl: (0, 0)),                  # W_k^T (resident)
            pl.BlockSpec((H, 1), lambda b, qi, ki, vl: (0, 0)),                   # w_v (resident)
        ],
        out_specs=tuple(out_specs),
        scratch_shapes=[
            pltpu.VMEM((tile_q, H), jnp.float32),   # hoisted query projection
            pltpu.VMEM((tile_q, 1), jnp.float32),   # running max m
            pltpu.VMEM((tile_q, 1), jnp.float32),   # running denom l
        ],
    )

    results = pl.pallas_call(
        kernel,
        out_shape=tuple(out_shape),
        grid_spec=grid_spec,
        compiler_params=pltpu.CompilerParams(
            dimension_semantics=("parallel", "parallel", "arbitrary"),
            vmem_limit_bytes=_vmem_limit_bytes()),
    )(vlen, qp, keys_t, vp, w_q, w_k_t, w_v)

    out = results[0][:, :Q, :]
    if return_attention_weights:
        return out, results[1][:, :Q, :K]
    return out


def _reference(queries, keys, values, valid_lens, w_q, w_k, w_v):
    """Plain-JAX reference matching the torch module (eval mode)."""
    qh = queries @ w_q
    kh = keys @ w_k
    feat = jnp.tanh(qh[:, :, None, :] + kh[:, None, :, :])
    scores = jnp.squeeze(feat @ w_v, -1)
    K = keys.shape[1]
    mask = jnp.arange(K)[None, None, :] < valid_lens.reshape(-1, 1, 1)
    attn = jax.nn.softmax(jnp.where(mask, scores, -1e6), axis=-1)
    out = jnp.einsum('bqk,bkv->bqv', attn, values)
    return out, attn


if __name__ == "__main__":
    key = jax.random.PRNGKey(0)
    kq, kwq, kwk, kwv = jax.random.split(key, 4)

    # ---- shapes from the reference d2l script ----
    B, Q, K = 2, 1, 10
    Dq, Dk, Dv, H = 2, 2, 4, 8

    keys_in = jnp.ones((B, K, Dk), jnp.float32)
    queries = jax.random.normal(kq, (B, Q, Dq), dtype=jnp.float32)
    values = jnp.tile(jnp.arange(40, dtype=jnp.float32).reshape(1, K, Dv), (B, 1, 1))
    valid_lens = jnp.array([2, 6], dtype=jnp.int32)

    w_q = 0.5 * jax.random.normal(kwq, (Dq, H), dtype=jnp.float32)
    w_k = 0.5 * jax.random.normal(kwk, (Dk, H), dtype=jnp.float32)
    w_v = 0.5 * jax.random.normal(kwv, (H, 1), dtype=jnp.float32)

    ref_out, ref_attn = _reference(queries, keys_in, values, valid_lens, w_q, w_k, w_v)

    # (1) with attention weights (tolerances absorb the approx-reciprocal normalization)
    out, attn = additive_attention(queries, keys_in, values, valid_lens, w_q, w_k, w_v,
                                   return_attention_weights=True)
    jax.block_until_ready((out, attn))
    assert jnp.allclose(attn, ref_attn, atol=1e-2), "attention weights mismatch"
    assert jnp.allclose(out, ref_out, rtol=1e-2, atol=1e-2), "output mismatch"

    # (2) output-only (flash-style: the (B,Q,K) attention matrix is never written to HBM)
    out_only = additive_attention(queries, keys_in, values, valid_lens, w_q, w_k, w_v)
    jax.block_until_ready(out_only)
    assert jnp.allclose(out_only, ref_out, rtol=1e-2, atol=1e-2), "output-only mismatch"

    # (3) larger multi-tile case: exercises K-tiling, online softmax carry, tile skipping,
    #     Q/K padding and multiple Q tiles.
    B2, Q2, K2 = 2, 20, 300
    Dq2, Dk2, Dv2, H2 = 3, 3, 6, 16
    ks = jax.random.split(jax.random.PRNGKey(1), 6)
    q2 = jax.random.normal(ks[0], (B2, Q2, Dq2), jnp.float32)
    k2 = jax.random.normal(ks[1], (B2, K2, Dk2), jnp.float32)
    v2 = jax.random.normal(ks[2], (B2, K2, Dv2), jnp.float32)
    wq2 = 0.3 * jax.random.normal(ks[3], (Dq2, H2), jnp.float32)
    wk2 = 0.3 * jax.random.normal(ks[4], (Dk2, H2), jnp.float32)
    wv2 = 0.3 * jax.random.normal(ks[5], (H2, 1), jnp.float32)
    vl2 = jnp.array([37, 300], jnp.int32)

    out2, attn2 = additive_attention(q2, k2, v2, vl2, wq2, wk2, wv2,
                                     tile_q=8, tile_k=128,
                                     return_attention_weights=True)
    jax.block_until_ready((out2, attn2))
    ref_out2, ref_attn2 = _reference(q2, k2, v2, vl2, wq2, wk2, wv2)
    assert jnp.allclose(attn2, ref_attn2, atol=1e-2), "tiled attention weights mismatch"
    assert jnp.allclose(out2, ref_out2, rtol=1e-2, atol=1e-2), "tiled output mismatch"

    # (4) bf16 feature datapath demo (only where the VPU/EUP have bf16: v6e / v7x)
    kind = jax.devices()[0].device_kind.lower()
    if ("v6" in kind) or ("v7" in kind):
        out_bf = additive_attention(queries, keys_in, values, valid_lens, w_q, w_k, w_v,
                                    feature_dtype=jnp.bfloat16)
        jax.block_until_ready(out_bf)
        assert jnp.allclose(out_bf, ref_out, rtol=0.1, atol=1.0), "bf16 feature path mismatch"

    print("KERNEL_OK")
</pallas_src>

<mosaic_0001>
module attributes {stable_mosaic.version = 11 : i64} {
  func.func @kernel(%arg0: i32, %arg1: i32, %arg2: i32, %arg3: memref<2xi32, #tpu.memory_space<smem>>, %arg4: memref<1x8x2xf32, #tpu.memory_space<vmem>>, %arg5: memref<1x2x128xf32, #tpu.memory_space<vmem>>, %arg6: memref<1x128x4xf32, #tpu.memory_space<vmem>>, %arg7: memref<2x8xf32, #tpu.memory_space<vmem>>, %arg8: memref<8x2xf32, #tpu.memory_space<vmem>>, %arg9: memref<8x1xf32, #tpu.memory_space<vmem>>, %arg10: memref<1x8x4xf32, #tpu.memory_space<vmem>>, %arg11: memref<1x8x128xf32, #tpu.memory_space<vmem>>, %arg12: memref<8x8xf32, #tpu.memory_space<vmem>>, %arg13: memref<8x1xf32, #tpu.memory_space<vmem>>, %arg14: memref<8x1xf32, #tpu.memory_space<vmem>>) attributes {dimension_semantics = [#tpu.dimension_semantics<parallel>, #tpu.dimension_semantics<parallel>, #tpu.dimension_semantics<arbitrary>], iteration_bounds = array<i64: 2, 1, 1>, scalar_prefetch = 1 : i64, scratch_operands = 3 : i64, tpu.core_type = #tpu.core_type<tc>, window_params = [{transform_indices = @transform_0, window_bounds = array<i64: 1, 8, 2>}, {transform_indices = @transform_1, window_bounds = array<i64: 1, 2, 128>}, {transform_indices = @transform_2, window_bounds = array<i64: 1, 128, 4>}, {pipeline_mode = #tpu.pipeline_mode<synchronous>, transform_indices = @transform_3, window_bounds = array<i64: 2, 8>}, {pipeline_mode = #tpu.pipeline_mode<synchronous>, transform_indices = @transform_4, window_bounds = array<i64: 8, 2>}, {pipeline_mode = #tpu.pipeline_mode<synchronous>, transform_indices = @transform_5, window_bounds = array<i64: 8, 1>}, {transform_indices = @transform_6, window_bounds = array<i64: 1, 8, 4>}, {transform_indices = @transform_7, window_bounds = array<i64: 1, 8, 128>}]} {
    %c0_i32 = arith.constant 0 : i32
    %0 = arith.cmpi eq, %arg2, %c0_i32 : i32
    %1 = arith.extui %0 : i1 to i32
    %c0_i32_0 = arith.constant 0 : i32
    %2 = arith.cmpi ne, %1, %c0_i32_0 : i32
    scf.if %2 {
      %c0 = arith.constant 0 : index
      %c0_5 = arith.constant 0 : index
      %c0_6 = arith.constant 0 : index
      %15 = vector.load %arg4[%c0, %c0_5, %c0_6] : memref<1x8x2xf32, #tpu.memory_space<vmem>>, vector<1x8x2xf32>
      %16 = vector.shape_cast %15 : vector<1x8x2xf32> to vector<8x2xf32>
      %c0_7 = arith.constant 0 : index
      %c0_8 = arith.constant 0 : index
      %17 = vector.load %arg7[%c0_7, %c0_8] : memref<2x8xf32, #tpu.memory_space<vmem>>, vector<2x8xf32>
      %cst = arith.constant dense<0.000000e+00> : vector<8x8xf32>
      %18 = tpu.matmul %16, %17, %cst {dimension_numbers = #tpu.dot_dimension_numbers<[1], [0], [0], [1], [0, 0, 1, 1], [], []>} : vector<8x2xf32>, vector<2x8xf32>, vector<8x8xf32> -> vector<8x8xf32>
      %c0_9 = arith.constant 0 : index
      %c0_10 = arith.constant 0 : index
      %19 = vector.load %arg12[%c0_9, %c0_10] : memref<8x8xf32, #tpu.memory_space<vmem>>, vector<8x8xf32>
      tpu.vector_store %arg12[%c0_9, %c0_10], %18 {strides = array<i32>} : memref<8x8xf32, #tpu.memory_space<vmem>>, vector<8x8xf32>,
      %cst_11 = arith.constant 0xFF800000 : f32
      %20 = vector.broadcast %cst_11 : f32 to vector<8x1xf32>
      %c0_12 = arith.constant 0 : index
      %c0_13 = arith.constant 0 : index
      %21 = vector.load %arg13[%c0_12, %c0_13] : memref<8x1xf32, #tpu.memory_space<vmem>>, vector<8x1xf32>
      tpu.vector_store %arg13[%c0_12, %c0_13], %20 {strides = array<i32>} : memref<8x1xf32, #tpu.memory_space<vmem>>, vector<8x1xf32>,
      %cst_14 = arith.constant 0.000000e+00 : f32
      %22 = vector.broadcast %cst_14 : f32 to vector<8x1xf32>
      %c0_15 = arith.constant 0 : index
      %c0_16 = arith.constant 0 : index
      %23 = vector.load %arg14[%c0_15, %c0_16] : memref<8x1xf32, #tpu.memory_space<vmem>>, vector<8x1xf32>
      tpu.vector_store %arg14[%c0_15, %c0_16], %22 {strides = array<i32>} : memref<8x1xf32, #tpu.memory_space<vmem>>, vector<8x1xf32>,
      %cst_17 = arith.constant 0.000000e+00 : f32
      %24 = vector.broadcast %cst_17 : f32 to vector<8x4xf32>
      %c0_18 = arith.constant 0 : index
      %c0_19 = arith.constant 0 : index
      %c0_20 = arith.constant 0 : index
      %25 = vector.load %arg10[%c0_18, %c0_19, %c0_20] : memref<1x8x4xf32, #tpu.memory_space<vmem>>, vector<1x8x4xf32>
      %26 = vector.shape_cast %25 : vector<1x8x4xf32> to vector<8x4xf32>
      %27 = vector.shape_cast %24 : vector<8x4xf32> to vector<1x8x4xf32>
      tpu.vector_store %arg10[%c0_18, %c0_19, %c0_20], %27 {strides = array<i32>} : memref<1x8x4xf32, #tpu.memory_space<vmem>>, vector<1x8x4xf32>,
      %cst_21 = arith.constant 0.000000e+00 : f32
      %28 = vector.broadcast %cst_21 : f32 to vector<8x128xf32>
      %c0_22 = arith.constant 0 : index
      %c0_23 = arith.constant 0 : index
      %c0_24 = arith.constant 0 : index
      %29 = vector.load %arg11[%c0_22, %c0_23, %c0_24] : memref<1x8x128xf32, #tpu.memory_space<vmem>>, vector<1x8x128xf32>
      %30 = vector.shape_cast %29 : vector<1x8x128xf32> to vector<8x128xf32>
      %31 = vector.shape_cast %28 : vector<8x128xf32> to vector<1x8x128xf32>
      tpu.vector_store %arg11[%c0_22, %c0_23, %c0_24], %31 {strides = array<i32>} : memref<1x8x128xf32, #tpu.memory_space<vmem>>, vector<1x8x128xf32>,
    } else {
    }
    %3 = arith.index_cast %arg0 : i32 to index
    %4 = memref.load %arg3[%3] : memref<2xi32, #tpu.memory_space<smem>>
    %c128_i32 = arith.constant 128 : i32
    %5 = arith.muli %arg2, %c128_i32 : i32
    %6 = tpu.assume_multiple %5, 128 : i32
    %7 = arith.cmpi slt, %6, %4 : i32
    %c0_i32_1 = arith.constant 0 : i32
    %8 = arith.cmpi eq, %arg2, %c0_i32_1 : i32
    %9 = arith.ori %7, %8 : i1
    %10 = arith.extui %9 : i1 to i32
    %c0_i32_2 = arith.constant 0 : i32
    %11 = arith.cmpi ne, %10, %c0_i32_2 : i32
    scf.if %11 {
      %c0 = arith.constant 0 : index
      %c0_5 = arith.constant 0 : index
      %15 = vector.load %arg8[%c0, %c0_5] : memref<8x2xf32, #tpu.memory_space<vmem>>, vector<8x2xf32>
      %c0_6 = arith.constant 0 : index
      %c0_7 = arith.constant 0 : index
      %c0_8 = arith.constant 0 : index
      %16 = vector.load %arg5[%c0_6, %c0_7, %c0_8] : memref<1x2x128xf32, #tpu.memory_space<vmem>>, vector<1x2x128xf32>
      %17 = vector.shape_cast %16 : vector<1x2x128xf32> to vector<2x128xf32>
      %cst = arith.constant dense<0.000000e+00> : vector<8x128xf32>
      %18 = tpu.matmul %15, %17, %cst {dimension_numbers = #tpu.dot_dimension_numbers<[1], [0], [0], [1], [0, 0, 1, 1], [], []>} : vector<8x2xf32>, vector<2x128xf32>, vector<8x128xf32> -> vector<8x128xf32>
      %c0_9 = arith.constant 0 : index
      %c0_10 = arith.constant 0 : index
      %19 = vector.load %arg12[%c0_9, %c0_10] : memref<8x8xf32, #tpu.memory_space<vmem>>, vector<8x8xf32>
      %20 = vector.shape_cast %19 : vector<8x8xf32> to vector<8x8x1xf32>
      %21 = vector.shape_cast %18 : vector<8x128xf32> to vector<1x8x128xf32>
      %22 = vector.broadcast %20 : vector<8x8x1xf32> to vector<8x8x128xf32>
      %23 = vector.broadcast %21 : vector<1x8x128xf32> to vector<8x8x128xf32>
      %24 = arith.addf %22, %23 : vector<8x8x128xf32>
      %25 = math.tanh %24 : vector<8x8x128xf32>
      %c0_11 = arith.constant 0 : index
      %c0_12 = arith.constant 0 : index
      %26 = vector.load %arg9[%c0_11, %c0_12] : memref<8x1xf32, #tpu.memory_space<vmem>>, vector<8x1xf32>
      %27 = vector.shape_cast %26 : vector<8x1xf32> to vector<1x8x1xf32>
      %28 = vector.broadcast %27 : vector<1x8x1xf32> to vector<8x8x128xf32>
      %29 = arith.mulf %25, %28 : vector<8x8x128xf32>
      %cst_13 = arith.constant dense<0.000000e+00> : vector<8x128xf32>
      %30 = vector.multi_reduction <add>, %29, %cst_13 [1] : vector<8x8x128xf32> to vector<8x128xf32>
      %31 = tpu.iota {dimensions = array<i32: 1>} : vector<8x128xi32>
      %32 = vector.broadcast %6 : i32 to vector<8x128xi32>
      %33 = arith.addi %32, %31 : vector<8x128xi32>
      %34 = vector.broadcast %4 : i32 to vector<8x128xi32>
      %35 = arith.cmpi slt, %33, %34 : vector<8x128xi32>
      %cst_14 = arith.constant -1.000000e+06 : f32
      %36 = vector.broadcast %cst_14 : f32 to vector<8x128xf32>
      %37 = arith.select %35, %30, %36 : vector<8x128xi1>, vector<8x128xf32>
      %c0_15 = arith.constant 0 : index
      %c0_16 = arith.constant 0 : index
      %38 = vector.load %arg13[%c0_15, %c0_16] : memref<8x1xf32, #tpu.memory_space<vmem>>, vector<8x1xf32>
      %cst_17 = arith.constant dense<0xFF800000> : vector<8xf32>
      %39 = vector.multi_reduction <maximumf>, %37, %cst_17 [1] : vector<8x128xf32> to vector<8xf32>
      %40 = vector.shape_cast %39 : vector<8xf32> to vector<8x1xf32>
      %41 = arith.maximumf %38, %40 : vector<8x1xf32>
      %42 = arith.subf %38, %41 : vector<8x1xf32>
      %43 = math.exp %42 : vector<8x1xf32>
      %44 = vector.broadcast %41 : vector<8x1xf32> to vector<8x128xf32>
      %45 = arith.subf %37, %44 : vector<8x128xf32>
      %46 = math.exp %45 : vector<8x128xf32>
      %c0_18 = arith.constant 0 : index
      %c0_19 = arith.constant 0 : index
      %47 = vector.load %arg14[%c0_18, %c0_19] : memref<8x1xf32, #tpu.memory_space<vmem>>, vector<8x1xf32>
      %48 = arith.mulf %43, %47 : vector<8x1xf32>
      %cst_20 = arith.constant dense<0.000000e+00> : vector<8xf32>
      %49 = vector.multi_reduction <add>, %46, %cst_20 [1] : vector<8x128xf32> to vector<8xf32>
      %50 = vector.shape_cast %49 : vector<8xf32> to vector<8x1xf32>
      %51 = arith.addf %48, %50 : vector<8x1xf32>
      %c0_21 = arith.constant 0 : index
      %c0_22 = arith.constant 0 : index
      %52 = vector.load %arg14[%c0_21, %c0_22] : memref<8x1xf32, #tpu.memory_space<vmem>>, vector<8x1xf32>
      tpu.vector_store %arg14[%c0_21, %c0_22], %51 {strides = array<i32>} : memref<8x1xf32, #tpu.memory_space<vmem>>, vector<8x1xf32>,
      %c0_23 = arith.constant 0 : index
      %c0_24 = arith.constant 0 : index
      %c0_25 = arith.constant 0 : index
      %53 = vector.load %arg10[%c0_23, %c0_24, %c0_25] : memref<1x8x4xf32, #tpu.memory_space<vmem>>, vector<1x8x4xf32>
      %54 = vector.shape_cast %53 : vector<1x8x4xf32> to vector<8x4xf32>
      %55 = vector.broadcast %43 : vector<8x1xf32> to vector<8x4xf32>
      %56 = arith.mulf %55, %54 : vector<8x4xf32>
      %c0_26 = arith.constant 0 : index
      %c0_27 = arith.constant 0 : index
      %c0_28 = arith.constant 0 : index
      %57 = vector.load %arg6[%c0_26, %c0_27, %c0_28] : memref<1x128x4xf32, #tpu.memory_space<vmem>>, vector<1x128x4xf32>
      %58 = vector.shape_cast %57 : vector<1x128x4xf32> to vector<128x4xf32>
      %cst_29 = arith.constant dense<0.000000e+00> : vector<8x4xf32>
      %59 = tpu.matmul %46, %58, %cst_29 {dimension_numbers = #tpu.dot_dimension_numbers<[1], [0], [0], [1], [0, 0, 1, 1], [], []>} : vector<8x128xf32>, vector<128x4xf32>, vector<8x4xf32> -> vector<8x4xf32>
      %60 = arith.addf %56, %59 : vector<8x4xf32>
      %c0_30 = arith.constant 0 : index
      %c0_31 = arith.constant 0 : index
      %c0_32 = arith.constant 0 : index
      %61 = vector.load %arg10[%c0_30, %c0_31, %c0_32] : memref<1x8x4xf32, #tpu.memory_space<vmem>>, vector<1x8x4xf32>
      %62 = vector.shape_cast %61 : vector<1x8x4xf32> to vector<8x4xf32>
      %63 = vector.shape_cast %60 : vector<8x4xf32> to vector<1x8x4xf32>
      tpu.vector_store %arg10[%c0_30, %c0_31, %c0_32], %63 {strides = array<i32>} : memref<1x8x4xf32, #tpu.memory_space<vmem>>, vector<1x8x4xf32>,
      %c0_33 = arith.constant 0 : index
      %c0_34 = arith.constant 0 : index
      %64 = vector.load %arg13[%c0_33, %c0_34] : memref<8x1xf32, #tpu.memory_space<vmem>>, vector<8x1xf32>
      tpu.vector_store %arg13[%c0_33, %c0_34], %41 {strides = array<i32>} : memref<8x1xf32, #tpu.memory_space<vmem>>, vector<8x1xf32>,
      %c0_i32_35 = arith.constant 0 : i32
      %65 = arith.cmpi sgt, %arg2, %c0_i32_35 : i32
      %66 = arith.extui %65 : i1 to i32
      %c0_i32_36 = arith.constant 0 : i32
      %67 = arith.cmpi ne, %66, %c0_i32_36 : i32
      scf.if %67 {
        %c0_39 = arith.constant 0 : index
        %c0_40 = arith.constant 0 : index
        %c0_41 = arith.constant 0 : index
        %72 = vector.load %arg11[%c0_39, %c0_40, %c0_41] : memref<1x8x128xf32, #tpu.memory_space<vmem>>, vector<1x8x128xf32>
        %73 = vector.shape_cast %72 : vector<1x8x128xf32> to vector<8x128xf32>
        %74 = vector.broadcast %43 : vector<8x1xf32> to vector<8x128xf32>
        %75 = arith.mulf %73, %74 : vector<8x128xf32>
        %c0_42 = arith.constant 0 : index
        %c0_43 = arith.constant 0 : index
        %c0_44 = arith.constant 0 : index
        %76 = vector.load %arg11[%c0_42, %c0_43, %c0_44] : memref<1x8x128xf32, #tpu.memory_space<vmem>>, vector<1x8x128xf32>
        %77 = vector.shape_cast %76 : vector<1x8x128xf32> to vector<8x128xf32>
        %78 = vector.shape_cast %75 : vector<8x128xf32> to vector<1x8x128xf32>
        tpu.vector_store %arg11[%c0_42, %c0_43, %c0_44], %78 {strides = array<i32>} : memref<1x8x128xf32, #tpu.memory_space<vmem>>, vector<1x8x128xf32>,
      } else {
      }
      %c0_37 = arith.constant 0 : index
      %c0_38 = arith.constant 0 : index
      %68 = arith.index_cast %6 : i32 to index
      %69 = vector.load %arg11[%c0_37, %c0_38, %68] : memref<1x8x128xf32, #tpu.memory_space<vmem>>, vector<1x8x128xf32>
      %70 = vector.shape_cast %69 : vector<1x8x128xf32> to vector<8x128xf32>
      %71 = vector.shape_cast %46 : vector<8x128xf32> to vector<1x8x128xf32>
      tpu.vector_store %arg11[%c0_37, %c0_38, %68], %71 {strides = array<i32>} : memref<1x8x128xf32, #tpu.memory_space<vmem>>, vector<1x8x128xf32>,
    } else {
    }
    %c0_i32_3 = arith.constant 0 : i32
    %12 = arith.cmpi eq, %arg2, %c0_i32_3 : i32
    %13 = arith.extui %12 : i1 to i32
    %c0_i32_4 = arith.constant 0 : i32
    %14 = arith.cmpi ne, %13, %c0_i32_4 : i32
    scf.if %14 {
      %c0 = arith.constant 0 : index
      %c0_5 = arith.constant 0 : index
      %15 = vector.load %arg14[%c0, %c0_5] : memref<8x1xf32, #tpu.memory_space<vmem>>, vector<8x1xf32>
      %16 = tpu.reciprocal %15 {approx = true} : vector<8x1xf32> -> vector<8x1xf32>
      %c0_6 = arith.constant 0 : index
      %c0_7 = arith.constant 0 : index
      %c0_8 = arith.constant 0 : index
      %17 = vector.load %arg10[%c0_6, %c0_7, %c0_8] : memref<1x8x4xf32, #tpu.memory_space<vmem>>, vector<1x8x4xf32>
      %18 = vector.shape_cast %17 : vector<1x8x4xf32> to vector<8x4xf32>
      %19 = vector.broadcast %16 : vector<8x1xf32> to vector<8x4xf32>
      %20 = arith.mulf %18, %19 : vector<8x4xf32>
      %c0_9 = arith.constant 0 : index
      %c0_10 = arith.constant 0 : index
      %c0_11 = arith.constant 0 : index
      %21 = vector.load %arg10[%c0_9, %c0_10, %c0_11] : memref<1x8x4xf32, #tpu.memory_space<vmem>>, vector<1x8x4xf32>
      %22 = vector.shape_cast %21 : vector<1x8x4xf32> to vector<8x4xf32>
      %23 = vector.shape_cast %20 : vector<8x4xf32> to vector<1x8x4xf32>
      tpu.vector_store %arg10[%c0_9, %c0_10, %c0_11], %23 {strides = array<i32>} : memref<1x8x4xf32, #tpu.memory_space<vmem>>, vector<1x8x4xf32>,
      %c0_12 = arith.constant 0 : index
      %c0_13 = arith.constant 0 : index
      %c0_14 = arith.constant 0 : index
      %24 = vector.load %arg11[%c0_12, %c0_13, %c0_14] : memref<1x8x128xf32, #tpu.memory_space<vmem>>, vector<1x8x128xf32>
      %25 = vector.shape_cast %24 : vector<1x8x128xf32> to vector<8x128xf32>
      %26 = vector.broadcast %16 : vector<8x1xf32> to vector<8x128xf32>
      %27 = arith.mulf %25, %26 : vector<8x128xf32>
      %c0_15 = arith.constant 0 : index
      %c0_16 = arith.constant 0 : index
      %c0_17 = arith.constant 0 : index
      %28 = vector.load %arg11[%c0_15, %c0_16, %c0_17] : memref<1x8x128xf32, #tpu.memory_space<vmem>>, vector<1x8x128xf32>
      %29 = vector.shape_cast %28 : vector<1x8x128xf32> to vector<8x128xf32>
      %30 = vector.shape_cast %27 : vector<8x128xf32> to vector<1x8x128xf32>
      tpu.vector_store %arg11[%c0_15, %c0_16, %c0_17], %30 {strides = array<i32>} : memref<1x8x128xf32, #tpu.memory_space<vmem>>, vector<1x8x128xf32>,
    } else {
    }
    return
  }
  func.func @transform_0(%arg0: i32, %arg1: i32, %arg2: i32, %arg3: memref<2xi32, #tpu.memory_space<smem>>) -> (i32, i32, i32) {
    %c0_i32 = arith.constant 0 : i32
    %c0_i32_0 = arith.constant 0 : i32
    return %arg0, %arg1, %c0_i32 : i32, i32, i32
  }
  func.func @transform_1(%arg0: i32, %arg1: i32, %arg2: i32, %arg3: memref<2xi32, #tpu.memory_space<smem>>) -> (i32, i32, i32) {
    %c0_i32 = arith.constant 0 : i32
    %c0_i32_0 = arith.constant 0 : i32
    return %arg0, %c0_i32, %arg2 : i32, i32, i32
  }
  func.func @transform_2(%arg0: i32, %arg1: i32, %arg2: i32, %arg3: memref<2xi32, #tpu.memory_space<smem>>) -> (i32, i32, i32) {
    %c0_i32 = arith.constant 0 : i32
    %c0_i32_0 = arith.constant 0 : i32
    return %arg0, %arg2, %c0_i32 : i32, i32, i32
  }
  func.func @transform_3(%arg0: i32, %arg1: i32, %arg2: i32, %arg3: memref<2xi32, #tpu.memory_space<smem>>) -> (i32, i32) {
    %c0_i32 = arith.constant 0 : i32
    %c0_i32_0 = arith.constant 0 : i32
    %c0_i32_1 = arith.constant 0 : i32
    return %c0_i32, %c0_i32_0 : i32, i32
  }
  func.func @transform_4(%arg0: i32, %arg1: i32, %arg2: i32, %arg3: memref<2xi32, #tpu.memory_space<smem>>) -> (i32, i32) {
    %c0_i32 = arith.constant 0 : i32
    %c0_i32_0 = arith.constant 0 : i32
    %c0_i32_1 = arith.constant 0 : i32
    return %c0_i32, %c0_i32_0 : i32, i32
  }
  func.func @transform_5(%arg0: i32, %arg1: i32, %arg2: i32, %arg3: memref<2xi32, #tpu.memory_space<smem>>) -> (i32, i32) {
    %c0_i32 = arith.constant 0 : i32
    %c0_i32_0 = arith.constant 0 : i32
    %c0_i32_1 = arith.constant 0 : i32
    return %c0_i32, %c0_i32_0 : i32, i32
  }
  func.func @transform_6(%arg0: i32, %arg1: i32, %arg2: i32, %arg3: memref<2xi32, #tpu.memory_space<smem>>) -> (i32, i32, i32) {
    %c0_i32 = arith.constant 0 : i32
    %c0_i32_0 = arith.constant 0 : i32
    return %arg0, %arg1, %c0_i32 : i32, i32, i32
  }
  func.func @transform_7(%arg0: i32, %arg1: i32, %arg2: i32, %arg3: memref<2xi32, #tpu.memory_space<smem>>) -> (i32, i32, i32) {
    %c0_i32 = arith.constant 0 : i32
    %c0_i32_0 = arith.constant 0 : i32
    return %arg0, %arg1, %c0_i32 : i32, i32, i32
  }
}

</mosaic_0001>

<llo_original>
// kernel: tpu_custom_call.1
$region0: #{tpu_custom_call.1}
  #allocation0 [shape = 'u32[]', space=smem, size = 0x4, offset = 0x4, fixed_abs, tag = 'smem constant byte address 0x4 - core index']
  #allocation1 [shape = 'u32[144,128]{1,0:T(1,128)}', space=vmem, size = 0x12000, scoped, tag = 'internal scratch']
  #allocation2 [shape = 'f32[8,8]{1,0:T(8,128)}', space=vmem, size = 0x1000, scoped, tag = 'scratch operand']
  #allocation3 [shape = 'f32[8,1]{1,0:T(8,128)}', space=vmem, size = 0x1000, scoped, tag = 'scratch operand']
  #allocation4 [shape = 'f32[8,1]{1,0:T(8,128)}', space=vmem, size = 0x1000, scoped, tag = 'scratch operand']
  #allocation5 [shape = 's32[1]{0}', space=sflag, size = 0x4, scoped, tag = 'scoped memory for tpu_custom_call.1']
  #allocation6 [shape = 'u8[512]{0}', space=smem, size = 0x200, scoped, tag = 'prefetched SMEM operand 0']
  %s0 = inlined_call_operand.vmem [shape: s32[2], index: 0, kind: input, shape index: {}]
  %s1 = inlined_call_operand.vmem [shape: f32[2,8,2], index: 1, kind: input, shape index: {}]
  %s2 = inlined_call_operand.vmem [shape: f32[2,2,128], index: 2, kind: input, shape index: {}]
  %s3 = inlined_call_operand.vmem [shape: f32[2,128,4], index: 3, kind: input, shape index: {}]
  %s4 = inlined_call_operand.vmem [shape: f32[2,8], index: 4, kind: input, shape index: {}]
  %s5 = inlined_call_operand.vmem [shape: f32[8,2], index: 5, kind: input, shape index: {}]
  %s6 = inlined_call_operand.vmem [shape: f32[8,1], index: 6, kind: input, shape index: {}]
  %s7 = inlined_call_operand.vmem [shape: f32[2,8,4], index: 7, kind: output, shape index: {0}]
  %s8 = inlined_call_operand.hbm [shape: f32[2,8,128], index: 8, kind: output, shape index: {1}]
  %9 = xla_tuple %s7, %s8
  %s10 = sld [smem:[#allocation0]]
  $region81: #{tpu_custom_call.1} parent=0
    _
  %s12 = ssub.s32 1, %s10
  %s13 = scalar_select 0, %s12, %s10
  %s14 = sshll.u32 %s0, 4
  %s15 = int_to_ptr.vmem [resolvable:$true] %s14
  %17 = dma.vmem_to_smem %s15, 16, [#allocation6], [#allocation5]
  %18 = dma.done [#allocation5], 16
  %19 = sfence
  $region1: #{tpu_custom_call.1} parent=0
    #allocation7 [shape = 'u8[8192]{0}', space=vmem, size = 0x2000, scoped, tag = 'output window, operand 1']
    #allocation8 [shape = 's32[2]{0}', space=sflag, size = 0x8, scoped, tag = 'scoped memory for tpu_custom_call.1']
    %20 = vsyncpa [#allocation8], 0
    %s21 = scalar_lea.sflag [#allocation8], 1
    %22 = vsyncpa %s21, 0
    loop: start=0, step=1, limit=4
    $region2: #{tpu_custom_call.1} parent=1 // loop_pre_header
      _
    $region3: #{tpu_custom_call.1} parent=1 // loop_header
      %s24 = sphi 0, %s28
      %p25 = scmp.ge.s32.totalorder %s24, 4
      %s31 = sphi 0, %s50
      %s32 = sphi 0, %s46
      %s33 = sphi 0, %s42
      %s34 = sphi 0, %s31
      %s35 = sphi 0, %s32
      %s36 = sphi 0, %s33
      %s37 = sphi 0, %s34
      %s38 = sphi 0, %s35
      %s39 = sphi 0, %s36
      %s55 = sphi 0, %s57
      %s58 = sphi 0, %s55
      %s59 = sphi 0, %s58
      %s75 = sphi 0, %s59
      %s83 = sphi 0, %s85
      %s86 = sphi 0, %s83
      %s87 = sphi 0, %s86
      %s103 = sphi 0, %s87
      %s111 = sphi 0, %s113
      %s114 = sphi 0, %s111
      %s115 = sphi 0, %s114
      %s131 = sphi 0, %s115
      %s135 = sphi 0, %s135
      %s137 = sphi 0, %s135
      %s138 = sphi 0, %s137
      %s152 = sphi 0, %s138
      %s156 = sphi 0, %s156
      %s158 = sphi 0, %s156
      %s159 = sphi 0, %s158
      %s173 = sphi 0, %s159
      %s177 = sphi 0, %s177
      %s179 = sphi 0, %s177
      %s180 = sphi 0, %s179
      %s194 = sphi 0, %s180
      %s202 = sphi 0, %s204
      %s205 = sphi 0, %s202
      %s206 = sphi 0, %s205
      %s222 = sphi 0, %s206
      %s230 = sphi 0, %s232
      %s233 = sphi 0, %s230
      %s234 = sphi 0, %s233
      %s250 = sphi 0, %s234
    $region4: #{tpu_custom_call.1} parent=1 // loop_header_branch
      %27 = sbr.rel (%p25) target = $region8
    $region5: #{tpu_custom_call.1} parent=1 // loop_body
      %s29 = ssub.s32 %s24, 1
      %s30 = ssub.s32 %s24, 2
      %s40 = sadd.s32 1, %s33
      %p41 = scmp.ge.s32.totalorder %s40, 1
      %s42 = scalar_select %p41, 0, %s40
      %s43 = sadd.s32 1, %s32
      %s44 = scalar_select %p41, %s43, %s32
      %p45 = scmp.ge.s32.totalorder %s44, 1
      %s46 = scalar_select %p45, 0, %s44
      %s47 = sadd.s32 1, %s31
      %s48 = scalar_select %p45, %s47, %s31
      %p49 = scmp.ge.s32.totalorder %s48, 2
      %s50 = scalar_select %p49, 0, %s48
      %s51 = ssub.s32 %s31, %s50
      %s52 = ssub.s32 %s32, %s46
      %s53 = sor.u32 %s51, %s52
      %p54 = scmp.eq.s32.totalorder %s53, 0
      %s56 = sadd.s32 %s55, 1
      %s57 = scalar_select %p54, %s55, %s56
      %p60 = pneg %p54
      %p61 = scmp.eq.s32.totalorder %s24, 1
      %p62 = por %p60, %p61
      %p63 = scmp.ne.s32.totalorder %s55, %s58
      %p64 = scmp.eq.s32.totalorder %s24, 0
      %p65 = por %p63, %p64
      %p66 = scmp.ne.s32.totalorder %s55, %s58
      %p67 = scmp.eq.s32.totalorder %s29, 1
      %p68 = por %p66, %p67
      %p69 = scmp.ne.s32.totalorder %s58, %s59
      %p70 = scmp.eq.s32.totalorder %s29, 0
      %p71 = por %p69, %p70
      %p72 = scmp.ne.s32.totalorder %s58, %s59
      %p73 = scmp.eq.s32.totalorder %s30, 1
      %p74 = por %p72, %p73
      %p76 = scmp.ne.s32.totalorder %s59, %s75
      %p77 = scmp.eq.s32.totalorder %s30, 0
      %p78 = por %p76, %p77
      %s79 = ssub.s32 %s31, %s50
      %s80 = ssub.s32 %s33, %s42
      %s81 = sor.u32 %s79, %s80
      %p82 = scmp.eq.s32.totalorder %s81, 0
      %s84 = sadd.s32 %s83, 1
      %s85 = scalar_select %p82, %s83, %s84
      %p88 = pneg %p82
      %p89 = scmp.eq.s32.totalorder %s24, 1
      %p90 = por %p88, %p89
      %p91 = scmp.ne.s32.totalorder %s83, %s86
      %p92 = scmp.eq.s32.totalorder %s24, 0
      %p93 = por %p91, %p92
      %p94 = scmp.ne.s32.totalorder %s83, %s86
      %p95 = scmp.eq.s32.totalorder %s29, 1
      %p96 = por %p94, %p95
      %p97 = scmp.ne.s32.totalorder %s86, %s87
      %p98 = scmp.eq.s32.totalorder %s29, 0
      %p99 = por %p97, %p98
      %p100 = scmp.ne.s32.totalorder %s86, %s87
      %p101 = scmp.eq.s32.totalorder %s30, 1
      %p102 = por %p100, %p101
      %p104 = scmp.ne.s32.totalorder %s87, %s103
      %p105 = scmp.eq.s32.totalorder %s30, 0
      %p106 = por %p104, %p105
      %s107 = ssub.s32 %s31, %s50
      %s108 = ssub.s32 %s33, %s42
      %s109 = sor.u32 %s107, %s108
      %p110 = scmp.eq.s32.totalorder %s109, 0
      %s112 = sadd.s32 %s111, 1
      %s113 = scalar_select %p110, %s111, %s112
      %p116 = pneg %p110
      %p117 = scmp.eq.s32.totalorder %s24, 1
      %p118 = por %p116, %p117
      %p119 = scmp.ne.s32.totalorder %s111, %s114
      %p120 = scmp.eq.s32.totalorder %s24, 0
      %p121 = por %p119, %p120
      %p122 = scmp.ne.s32.totalorder %s111, %s114
      %p123 = scmp.eq.s32.totalorder %s29, 1
      %p124 = por %p122, %p123
      %p125 = scmp.ne.s32.totalorder %s114, %s115
      %p126 = scmp.eq.s32.totalorder %s29, 0
      %p127 = por %p125, %p126
      %p128 = scmp.ne.s32.totalorder %s114, %s115
      %p129 = scmp.eq.s32.totalorder %s30, 1
      %p130 = por %p128, %p129
      %p132 = scmp.ne.s32.totalorder %s115, %s131
      %p133 = scmp.eq.s32.totalorder %s30, 0
      %p134 = por %p132, %p133
      %s136 = sadd.s32 %s135, 1
      %p139 = scmp.eq.s32.totalorder %s24, 1
      %p140 = scmp.ne.s32.totalorder %s135, %s137
      %p141 = scmp.eq.s32.totalorder %s24, 0
      %p142 = por %p140, %p141
      %p143 = scmp.ne.s32.totalorder %s135, %s137
      %p144 = scmp.eq.s32.totalorder %s29, 1
      %p145 = por %p143, %p144
      %p146 = scmp.ne.s32.totalorder %s137, %s138
      %p147 = scmp.eq.s32.totalorder %s29, 0
      %p148 = por %p146, %p147
      %p149 = scmp.ne.s32.totalorder %s137, %s138
      %p150 = scmp.eq.s32.totalorder %s30, 1
      %p151 = por %p149, %p150
      %p153 = scmp.ne.s32.totalorder %s138, %s152
      %p154 = scmp.eq.s32.totalorder %s30, 0
      %p155 = por %p153, %p154
      %s157 = sadd.s32 %s156, 1
      %p160 = scmp.eq.s32.totalorder %s24, 1
      %p161 = scmp.ne.s32.totalorder %s156, %s158
      %p162 = scmp.eq.s32.totalorder %s24, 0
      %p163 = por %p161, %p162
      %p164 = scmp.ne.s32.totalorder %s156, %s158
      %p165 = scmp.eq.s32.totalorder %s29, 1
      %p166 = por %p164, %p165
      %p167 = scmp.ne.s32.totalorder %s158, %s159
      %p168 = scmp.eq.s32.totalorder %s29, 0
      %p169 = por %p167, %p168
      %p170 = scmp.ne.s32.totalorder %s158, %s159
      %p171 = scmp.eq.s32.totalorder %s30, 1
      %p172 = por %p170, %p171
      %p174 = scmp.ne.s32.totalorder %s159, %s173
      %p175 = scmp.eq.s32.totalorder %s30, 0
      %p176 = por %p174, %p175
      %s178 = sadd.s32 %s177, 1
      %p181 = scmp.eq.s32.totalorder %s24, 1
      %p182 = scmp.ne.s32.totalorder %s177, %s179
      %p183 = scmp.eq.s32.totalorder %s24, 0
      %p184 = por %p182, %p183
      %p185 = scmp.ne.s32.totalorder %s177, %s179
      %p186 = scmp.eq.s32.totalorder %s29, 1
      %p187 = por %p185, %p186
      %p188 = scmp.ne.s32.totalorder %s179, %s180
      %p189 = scmp.eq.s32.totalorder %s29, 0
      %p190 = por %p188, %p189
      %p191 = scmp.ne.s32.totalorder %s179, %s180
      %p192 = scmp.eq.s32.totalorder %s30, 1
      %p193 = por %p191, %p192
      %p195 = scmp.ne.s32.totalorder %s180, %s194
      %p196 = scmp.eq.s32.totalorder %s30, 0
      %p197 = por %p195, %p196
      %s198 = ssub.s32 %s31, %s50
      %s199 = ssub.s32 %s32, %s46
      %s200 = sor.u32 %s198, %s199
      %p201 = scmp.eq.s32.totalorder %s200, 0
      %s203 = sadd.s32 %s202, 1
      %s204 = scalar_select %p201, %s202, %s203
      %p207 = pneg %p201
      %p208 = scmp.eq.s32.totalorder %s24, 1
      %p209 = por %p207, %p208
      %p210 = scmp.ne.s32.totalorder %s202, %s205
      %p211 = scmp.eq.s32.totalorder %s24, 0
      %p212 = por %p210, %p211
      %p213 = scmp.ne.s32.totalorder %s202, %s205
      %p214 = scmp.eq.s32.totalorder %s29, 1
      %p215 = por %p213, %p214
      %p216 = scmp.ne.s32.totalorder %s205, %s206
      %p217 = scmp.eq.s32.totalorder %s29, 0
      %p218 = por %p216, %p217
      %p219 = scmp.ne.s32.totalorder %s205, %s206
      %p220 = scmp.eq.s32.totalorder %s30, 1
      %p221 = por %p219, %p220
      %p223 = scmp.ne.s32.totalorder %s206, %s222
      %p224 = scmp.eq.s32.totalorder %s30, 0
      %p225 = por %p223, %p224
      %s226 = ssub.s32 %s31, %s50
      %s227 = ssub.s32 %s32, %s46
      %s228 = sor.u32 %s226, %s227
      %p229 = scmp.eq.s32.totalorder %s228, 0
      %s231 = sadd.s32 %s230, 1
      %s232 = scalar_select %p229, %s230, %s231
      %p235 = pneg %p229
      %p236 = scmp.eq.s32.totalorder %s24, 1
      %p237 = por %p235, %p236
      %p238 = scmp.ne.s32.totalorder %s230, %s233
      %p239 = scmp.eq.s32.totalorder %s24, 0
      %p240 = por %p238, %p239
      %p241 = scmp.ne.s32.totalorder %s230, %s233
      %p242 = scmp.eq.s32.totalorder %s29, 1
      %p243 = por %p241, %p242
      %p244 = scmp.ne.s32.totalorder %s233, %s234
      %p245 = scmp.eq.s32.totalorder %s29, 0
      %p246 = por %p244, %p245
      %p247 = scmp.ne.s32.totalorder %s233, %s234
      %p248 = scmp.eq.s32.totalorder %s30, 1
      %p249 = por %p247, %p248
      %p251 = scmp.ne.s32.totalorder %s234, %s250
      %p252 = scmp.eq.s32.totalorder %s30, 0
      %p253 = por %p251, %p252
      %p254 = scmp.le.s32.totalorder 1, %s24
      %p255 = scmp.lt.s32.totalorder %s24, 3
      %p256 = pnand %p254, %p255
      %p257 = pneg %p256
      // Predicated region
      $region9: #{tpu_custom_call.1} parent=5 // pred_check
        _
      $region10: #{tpu_custom_call.1} parent=5 // pred_check_branch
        %259 = sbr.rel (%p256) target = $region12
      $region11: #{tpu_custom_call.1} parent=5 // pred_region
        %s260 = ssub.s32 %s24, 1
        // Predicated region
        $region13: #{tpu_custom_call.1} parent=11 // pred_check
          %p261 = pneg %p148
        $region14: #{tpu_custom_call.1} parent=11 // pred_check_branch
          %263 = sbr.rel (%p261) target = $region16
        $region15: #{tpu_custom_call.1} parent=11 // pred_region
          _
        $region16: #{tpu_custom_call.1} parent=11 // pred_fallthru
          _
        // Predicated region
        $region17: #{tpu_custom_call.1} parent=11 // pred_check
          %p264 = pneg %p169
        $region18: #{tpu_custom_call.1} parent=11 // pred_check_branch
          %266 = sbr.rel (%p264) target = $region20
        $region19: #{tpu_custom_call.1} parent=11 // pred_region
          _
        $region20: #{tpu_custom_call.1} parent=11 // pred_fallthru
          _
        // Predicated region
        $region21: #{tpu_custom_call.1} parent=11 // pred_check
          %p267 = pneg %p190
        $region22: #{tpu_custom_call.1} parent=11 // pred_check_branch
          %269 = sbr.rel (%p267) target = $region24
        $region23: #{tpu_custom_call.1} parent=11 // pred_region
          _
        $region24: #{tpu_custom_call.1} parent=11 // pred_fallthru
          _
      $region12: #{tpu_custom_call.1} parent=5 // pred_fallthru
        _
      %p270 = scmp.lt.s32.totalorder %s24, 2
      // Predicated region
      $region25: #{tpu_custom_call.1} parent=5 // pred_check
        %p271 = pneg %p270
      $region26: #{tpu_custom_call.1} parent=5 // pred_check_branch
        %273 = sbr.rel (%p271) target = $region28
      $region27: #{tpu_custom_call.1} parent=5 // pred_region
        // Predicated region
        $region29: #{tpu_custom_call.1} parent=27 // pred_check
          %p274 = pneg %p65
        $region30: #{tpu_custom_call.1} parent=27 // pred_check_branch
          %276 = sbr.rel (%p274) target = $region32
        $region31: #{tpu_custom_call.1} parent=27 // pred_region
          %p277 = scmp.lt.s32.totalorder %s31, 1
          %s278 = scalar_select %p277, %s31, 1
          %p279 = scmp.lt.s32.totalorder %s32, 0
          %s280 = scalar_select %p279, %s32, 0
          %s281 = sadd.s32 %s280, %s278
          %s282 = smul.addr %s281, 8
          %s283 = scalar_lea.vmem %s1, %s282
        $region32: #{tpu_custom_call.1} parent=27 // pred_fallthru
          _
        // Predicated region
        $region33: #{tpu_custom_call.1} parent=27 // pred_check
          %p284 = pneg %p93
        $region34: #{tpu_custom_call.1} parent=27 // pred_check_branch
          %286 = sbr.rel (%p284) target = $region36
        $region35: #{tpu_custom_call.1} parent=27 // pred_region
          %p287 = scmp.lt.s32.totalorder %s31, 1
          %s288 = scalar_select %p287, %s31, 1
          %p289 = scmp.lt.s32.totalorder %s33, 0
          %s290 = scalar_select %p289, %s33, 0
          %s291 = sadd.s32 %s290, %s288
          %s292 = smul.addr %s291, 2
          %s293 = scalar_lea.vmem %s2, %s292
        $region36: #{tpu_custom_call.1} parent=27 // pred_fallthru
          _
        // Predicated region
        $region37: #{tpu_custom_call.1} parent=27 // pred_check
          %p294 = pneg %p121
        $region38: #{tpu_custom_call.1} parent=27 // pred_check_branch
          %296 = sbr.rel (%p294) target = $region40
        $region39: #{tpu_custom_call.1} parent=27 // pred_region
          %s297 = smul.u32 16, %s33
          %p298 = scmp.lt.s32.totalorder %s31, 1
          %s299 = scalar_select %p298, %s31, 1
          %p300 = scmp.lt.s32.totalorder %s297, 15
          %s301 = scalar_select %p300, %s297, 15
          %s302 = smul.addr %s299, 16
          %s303 = sadd.s32 %s301, %s302
          %s304 = smul.addr %s303, 8
          %s305 = scalar_lea.vmem %s3, %s304
          %s306 = smul.u32 16, %s33
        $region40: #{tpu_custom_call.1} parent=27 // pred_fallthru
          _
      $region28: #{tpu_custom_call.1} parent=5 // pred_fallthru
        _
      %p307 = scmp.le.s32.totalorder 1, %s24
      %p308 = scmp.lt.s32.totalorder %s24, 3
      %p309 = pnand %p307, %p308
      %p310 = pneg %p309
      // Predicated region
      $region41: #{tpu_custom_call.1} parent=5 // pred_check
        _
      $region42: #{tpu_custom_call.1} parent=5 // pred_check_branch
        %312 = sbr.rel (%p309) target = $region44
      $region43: #{tpu_custom_call.1} parent=5 // pred_region
        %s313 = ssub.s32 %s24, 1
        %p314 = scmp.lt.s32.totalorder %s34, 1
        %s315 = scalar_select %p314, %s34, 1
        %p316 = scmp.lt.s32.totalorder %s35, 0
        %s317 = scalar_select %p316, %s35, 0
        %s318 = sadd.s32 %s317, %s315
        %s319 = smul.addr %s318, 8
        %s320 = scalar_lea.vmem %s1, %s319
        %p321 = pneg %p71
        %p322 = pneg %p68
        %p323 = scmp.lt.s32.totalorder %s34, 1
        %s324 = scalar_select %p323, %s34, 1
        %p325 = scmp.lt.s32.totalorder %s36, 0
        %s326 = scalar_select %p325, %s36, 0
        %s327 = sadd.s32 %s326, %s324
        %s328 = smul.addr %s327, 2
        %s329 = scalar_lea.vmem %s2, %s328
        %p330 = pneg %p99
        %p331 = pneg %p96
        %s332 = smul.u32 16, %s36
        %p333 = scmp.lt.s32.totalorder %s34, 1
        %s334 = scalar_select %p333, %s34, 1
        %p335 = scmp.lt.s32.totalorder %s332, 15
        %s336 = scalar_select %p335, %s332, 15
        %s337 = smul.addr %s334, 16
        %s338 = sadd.s32 %s336, %s337
        %s339 = smul.addr %s338, 8
        %s340 = scalar_lea.vmem %s3, %s339
        %p341 = pneg %p127
        %p342 = pneg %p124
        %p343 = pneg %p148
        %p344 = pneg %p145
        %p345 = pneg %p169
        %p346 = pneg %p166
        %p347 = pneg %p190
        %p348 = pneg %p187
        %p349 = pneg %p218
        %p350 = pneg %p215
        %p351 = scmp.lt.s32.totalorder %s34, 1
        %s352 = scalar_select %p351, %s34, 1
        %p353 = scmp.lt.s32.totalorder %s35, 0
        %s354 = scalar_select %p353, %s35, 0
        %s355 = sadd.s32 %s354, %s352
        %s356 = smul.addr %s355, 8
        %s357 = scalar_lea.vmem %s7, %s356
        %p358 = pneg %p246
        %p359 = pneg %p243
        %s360 = sand.u32 %s233, 1
        %s361 = scalar_lea.sflag [#allocation8], %s360
        %s362 = sand.u32 %s233, 1
        %s363 = smul.addr %s362, 8
        %s364 = scalar_lea.vmem [#allocation7], %s363
        %p365 = scmp.lt.s32.totalorder %s34, 1
        %s366 = scalar_select %p365, %s34, 1
        %p367 = scmp.lt.s32.totalorder %s35, 0
        %s368 = scalar_select %p367, %s35, 0
        %s369 = sadd.s32 %s368, %s366
        %s370 = smul.addr %s369, 8
        %s371 = scalar_lea.vmem %s1, %s370
        %p372 = scmp.lt.s32.totalorder %s34, 1
        %s373 = scalar_select %p372, %s34, 1
        %p374 = scmp.lt.s32.totalorder %s36, 0
        %s375 = scalar_select %p374, %s36, 0
        %s376 = sadd.s32 %s375, %s373
        %s377 = smul.addr %s376, 2
        %s378 = scalar_lea.vmem %s2, %s377
        %s379 = smul.u32 16, %s36
        %p380 = scmp.lt.s32.totalorder %s34, 1
        %s381 = scalar_select %p380, %s34, 1
        %p382 = scmp.lt.s32.totalorder %s379, 15
        %s383 = scalar_select %p382, %s379, 15
        %s384 = smul.addr %s381, 16
        %s385 = sadd.s32 %s383, %s384
        %s386 = smul.addr %s385, 8
        %s387 = scalar_lea.vmem %s3, %s386
        %s388 = smul.u32 16, %s36
        %p389 = scmp.lt.s32.totalorder %s34, 1
        %s390 = scalar_select %p389, %s34, 1
        %p391 = scmp.lt.s32.totalorder %s35, 0
        %s392 = scalar_select %p391, %s35, 0
        %s393 = sadd.s32 %s392, %s390
        %s394 = smul.addr %s393, 8
        %s395 = scalar_lea.vmem %s7, %s394
        %p396 = scmp.eq.s32.totalorder %s36, 0
        // Predicated region
        $region45: #{tpu_custom_call.1} parent=43 // pred_check
          %p397 = pneg %p396
        $region46: #{tpu_custom_call.1} parent=43 // pred_check_branch
          %399 = sbr.rel (%p397) target = $region48
        $region47: #{tpu_custom_call.1} parent=43 // pred_region
          %v400 = vld [vmem:[%s371] sm:$0xff]
          %v401 = vld [vmem:[%s4] sm:$0x3]
          %vm402 = vcmask 15360
          %v404 = vsel %vm402, %v400, 0
          %vm406 = vcmask 1041408
          %v408 = vsel %vm406, %v401, 0
          %410 = vmatprep.subr.mxu0 0.0
          %411 = vmatpush1.msra.mxu0 0.0
          %412 = vmatprep.subr.mxu0 0.0
          %413 = vmatpush1.msra.mxu0 0.0
          %414 = vmatprep.subr.mxu0 0.0
          %415 = vmatpush1.msra.mxu0 0.0
          %416 = vmatprep.subr.mxu0 0.0
          %417 = vmatpush1.msra.mxu0 0.0
          %418 = vmatprep.subr.mxu0 0.0
          %419 = vmatpush1.msra.mxu0 0.0
          %420 = vmatprep.subr.mxu0 0.0
          %421 = vmatpush1.msra.mxu0 0.0
          %422 = vmatprep.subr.mxu0 0.0
          %423 = vmatpush1.msra.mxu0 0.0
          %424 = vmatprep.subr.mxu0 0.0
          %425 = vmatpush1.msra.mxu0 0.0
          %426 = vmatprep.subr.mxu0 0.0
          %427 = vmatpush1.msra.mxu0 0.0
          %428 = vmatprep.subr.mxu0 0.0
          %429 = vmatpush1.msra.mxu0 0.0
          %430 = vmatprep.subr.mxu0 0.0
          %431 = vmatpush1.msra.mxu0 0.0
          %432 = vmatprep.subr.mxu0 0.0
          %433 = vmatpush1.msra.mxu0 0.0
          %434 = vmatprep.subr.mxu0 0.0
          %435 = vmatpush1.msra.mxu0 0.0
          %436 = vmatprep.subr.mxu0 0.0
          %437 = vmatpush1.msra.mxu0 0.0
          %438 = vmatprep.subr.mxu0 0.0
          %439 = vmatpush1.msra.mxu0 0.0
          %440 = vmatprep.subr.mxu0 0.0
          %441 = vmatpush1.msra.mxu0 %v408
          %442 = vmatprep.subr.mxu0 0.0
          %443 = vmatpush2.msra.mxu0 0.0
          %444 = vmatprep.subr.mxu0 0.0
          %445 = vmatpush2.msra.mxu0 0.0
          %446 = vmatprep.subr.mxu0 0.0
          %447 = vmatpush2.msra.mxu0 0.0
          %448 = vmatprep.subr.mxu0 0.0
          %449 = vmatpush2.msra.mxu0 0.0
          %450 = vmatprep.subr.mxu0 0.0
          %451 = vmatpush2.msra.mxu0 0.0
          %452 = vmatprep.subr.mxu0 0.0
          %453 = vmatpush2.msra.mxu0 0.0
          %454 = vmatprep.subr.mxu0 0.0
          %455 = vmatpush2.msra.mxu0 0.0
          %456 = vmatprep.subr.mxu0 0.0
          %457 = vmatpush2.msra.mxu0 0.0
          %458 = vmatprep.subr.mxu0 0.0
          %459 = vmatpush2.msra.mxu0 0.0
          %460 = vmatprep.subr.mxu0 0.0
          %461 = vmatpush2.msra.mxu0 0.0
          %462 = vmatprep.subr.mxu0 0.0
          %463 = vmatpush2.msra.mxu0 0.0
          %464 = vmatprep.subr.mxu0 0.0
          %465 = vmatpush2.msra.mxu0 0.0
          %466 = vmatprep.subr.mxu0 0.0
          %467 = vmatpush2.msra.mxu0 0.0
          %468 = vmatprep.subr.mxu0 0.0
          %469 = vmatpush2.msra.mxu0 0.0
          %470 = vmatprep.subr.mxu0 0.0
          %471 = vmatpush2.msra.mxu0 0.0
          %472 = vmatprep.subr.mxu0 0.0
          %473 = vmatpush2.msra.mxu0 0.0
          %474 = vmatprep.mubr.f32.mxu0 0.0
          %475 = vmatmul.mubr.f32.gmra.mxu0 %v404
          %v476 = vpop.f32.mrf.mxu0
          %v477 = vadd.f32 0.0, %v476
          %v478 = vpop.f32.mrf.mxu0
          %479 = vdwg.mxu0
          %vm480 = vcmask 64512
          %481 = vst.msk [vmem:[#allocation2] sm:$0xff] %vm480, %v477
          %vm482 = vcmask 7168
          %483 = vst.msk [vmem:[#allocation3] sm:$0xff] %vm482, -inf
          %484 = vst.msk [vmem:[#allocation4] sm:$0xff] %vm482, 0.0
          %vm485 = vcmask 31744
          %486 = vst.msk [vmem:[%s395] sm:$0xff] %vm485, 0.0
          %487 = vst [vmem:[%s364] sm:$0xff] 0.0
        $region48: #{tpu_custom_call.1} parent=43 // pred_fallthru
          _
        %s488 = sld [smem:[#allocation6 + %s34]]
        %s489 = smul.u32 %s36, 128
        %p490 = scmp.lt.s32.totalorder %s489, %s488
        %p491 = por %p490, %p396
        // Predicated region
        $region49: #{tpu_custom_call.1} parent=43 // pred_check
          %p492 = pneg %p491
        $region50: #{tpu_custom_call.1} parent=43 // pred_check_branch
          %494 = sbr.rel (%p492) target = $region52
        $region51: #{tpu_custom_call.1} parent=43 // pred_region
          %v495 = vld [vmem:[%s5] sm:$0xff]
          %v496 = vld [vmem:[%s378] sm:$0x3]
          %vm497 = vcmask 15360
          %v499 = vsel %vm497, %v495, 0
          %vm501 = vcmask 1041408
          %v503 = vsel %vm501, %v496, 0
          %505 = vmatprep.subr.mxu0 0.0
          %506 = vmatpush1.msra.mxu0 0.0
          %507 = vmatprep.subr.mxu0 0.0
          %508 = vmatpush1.msra.mxu0 0.0
          %509 = vmatprep.subr.mxu0 0.0
          %510 = vmatpush1.msra.mxu0 0.0
          %511 = vmatprep.subr.mxu0 0.0
          %512 = vmatpush1.msra.mxu0 0.0
          %513 = vmatprep.subr.mxu0 0.0
          %514 = vmatpush1.msra.mxu0 0.0
          %515 = vmatprep.subr.mxu0 0.0
          %516 = vmatpush1.msra.mxu0 0.0
          %517 = vmatprep.subr.mxu0 0.0
          %518 = vmatpush1.msra.mxu0 0.0
          %519 = vmatprep.subr.mxu0 0.0
          %520 = vmatpush1.msra.mxu0 0.0
          %521 = vmatprep.subr.mxu0 0.0
          %522 = vmatpush1.msra.mxu0 0.0
          %523 = vmatprep.subr.mxu0 0.0
          %524 = vmatpush1.msra.mxu0 0.0
          %525 = vmatprep.subr.mxu0 0.0
          %526 = vmatpush1.msra.mxu0 0.0
          %527 = vmatprep.subr.mxu0 0.0
          %528 = vmatpush1.msra.mxu0 0.0
          %529 = vmatprep.subr.mxu0 0.0
          %530 = vmatpush1.msra.mxu0 0.0
          %531 = vmatprep.subr.mxu0 0.0
          %532 = vmatpush1.msra.mxu0 0.0
          %533 = vmatprep.subr.mxu0 0.0
          %534 = vmatpush1.msra.mxu0 0.0
          %535 = vmatprep.subr.mxu0 0.0
          %536 = vmatpush1.msra.mxu0 %v503
          %537 = vmatprep.subr.mxu0 0.0
          %538 = vmatpush2.msra.mxu0 0.0
          %539 = vmatprep.subr.mxu0 0.0
          %540 = vmatpush2.msra.mxu0 0.0
          %541 = vmatprep.subr.mxu0 0.0
          %542 = vmatpush2.msra.mxu0 0.0
          %543 = vmatprep.subr.mxu0 0.0
          %544 = vmatpush2.msra.mxu0 0.0
          %545 = vmatprep.subr.mxu0 0.0
          %546 = vmatpush2.msra.mxu0 0.0
          %547 = vmatprep.subr.mxu0 0.0
          %548 = vmatpush2.msra.mxu0 0.0
          %549 = vmatprep.subr.mxu0 0.0
          %550 = vmatpush2.msra.mxu0 0.0
          %551 = vmatprep.subr.mxu0 0.0
          %552 = vmatpush2.msra.mxu0 0.0
          %553 = vmatprep.subr.mxu0 0.0
          %554 = vmatpush2.msra.mxu0 0.0
          %555 = vmatprep.subr.mxu0 0.0
          %556 = vmatpush2.msra.mxu0 0.0
          %557 = vmatprep.subr.mxu0 0.0
          %558 = vmatpush2.msra.mxu0 0.0
          %559 = vmatprep.subr.mxu0 0.0
          %560 = vmatpush2.msra.mxu0 0.0
          %561 = vmatprep.subr.mxu0 0.0
          %562 = vmatpush2.msra.mxu0 0.0
          %563 = vmatprep.subr.mxu0 0.0
          %564 = vmatpush2.msra.mxu0 0.0
          %565 = vmatprep.subr.mxu0 0.0
          %566 = vmatpush2.msra.mxu0 0.0
          %567 = vmatprep.subr.mxu0 0.0
          %568 = vmatpush2.msra.mxu0 0.0
          %569 = vmatprep.mubr.f32.mxu0 0.0
          %570 = vmatmul.mubr.f32.gmra.mxu0 %v499
          %v571 = vpop.f32.mrf.mxu0
          %v572 = vadd.f32 0.0, %v571
          %v573 = vpop.f32.mrf.mxu0
          %574 = vdwg.mxu0
          %v575 = vld [vmem:[#allocation2] sm:$0xff]
          %v576 = vlaneseq
          %v577 = vshrl.u32 %v576, 7
          %v578 = vsub.s32 0, %v577
          %v579 = vrot.slane %v575, %v578
          %581 = vbcast.lane.b32.xlu0 %v579, 256
          %v582 = vpop.permute.xlu0 %581
          %v583 = vlaneseq
          %v584 = vshrl.u32 %v583, 7
          %v585 = vsub.s32 1, %v584
          %v586 = vrot.slane %v575, %v585
          %588 = vbcast.lane.b32.xlu0 %v586, 256
          %v589 = vpop.permute.xlu0 %588
          %v590 = vlaneseq
          %v591 = vshrl.u32 %v590, 7
          %v592 = vsub.s32 2, %v591
          %v593 = vrot.slane %v575, %v592
          %595 = vbcast.lane.b32.xlu0 %v593, 256
          %v596 = vpop.permute.xlu0 %595
          %v597 = vlaneseq
          %v598 = vshrl.u32 %v597, 7
          %v599 = vsub.s32 3, %v598
          %v600 = vrot.slane %v575, %v599
          %602 = vbcast.lane.b32.xlu0 %v600, 256
          %v603 = vpop.permute.xlu0 %602
          %v604 = vlaneseq
          %v605 = vshrl.u32 %v604, 7
          %v606 = vsub.s32 4, %v605
          %v607 = vrot.slane %v575, %v606
          %609 = vbcast.lane.b32.xlu0 %v607, 256
          %v610 = vpop.permute.xlu0 %609
          %v611 = vlaneseq
          %v612 = vshrl.u32 %v611, 7
          %v613 = vsub.s32 5, %v612
          %v614 = vrot.slane %v575, %v613
          %616 = vbcast.lane.b32.xlu0 %v614, 256
          %v617 = vpop.permute.xlu0 %616
          %v618 = vlaneseq
          %v619 = vshrl.u32 %v618, 7
          %v620 = vsub.s32 6, %v619
          %v621 = vrot.slane %v575, %v620
          %623 = vbcast.lane.b32.xlu0 %v621, 256
          %v624 = vpop.permute.xlu0 %623
          %v625 = vlaneseq
          %v626 = vshrl.u32 %v625, 7
          %v627 = vsub.s32 7, %v626
          %v628 = vrot.slane %v575, %v627
          %630 = vbcast.lane.b32.xlu0 %v628, 256
          %v631 = vpop.permute.xlu0 %630
          %v632 = vadd.f32 %v582, %v572
          %v633 = vadd.f32 %v589, %v572
          %v634 = vadd.f32 %v596, %v572
          %v635 = vadd.f32 %v603, %v572
          %v636 = vadd.f32 %v610, %v572
          %v637 = vadd.f32 %v617, %v572
          %v638 = vadd.f32 %v624, %v572
          %v639 = vadd.f32 %v631, %v572
          %v640 = vtanh.pop %v632
          %v641 = vtanh.pop %v633
          %v642 = vtanh.pop %v634
          %v643 = vtanh.pop %v635
          %v644 = vtanh.pop %v636
          %v645 = vtanh.pop %v637
          %v646 = vtanh.pop %v638
          %v647 = vtanh.pop %v639
          %v648 = vld [vmem:[%s6] sm:$0xff]
          %650 = vset.pattern.permute.xlu0 0
          %651 = vperm.xlu0 %650, %v648
          %v652 = vpop.permute.xlu0 %651
          %v654 = vmul.f32 %v640, %v652
          %v655 = vmul.f32 %v641, %v652
          %v656 = vmul.f32 %v642, %v652
          %v657 = vmul.f32 %v643, %v652
          %v658 = vmul.f32 %v644, %v652
          %v659 = vmul.f32 %v645, %v652
          %v660 = vmul.f32 %v646, %v652
          %v661 = vmul.f32 %v647, %v652
          %v662 = vrot.slane %v654, 4
          %v663 = vadd.f32 %v654, %v662
          %v664 = vrot.slane %v663, 2
          %v665 = vadd.f32 %v663, %v664
          %v666 = vrot.slane %v665, 1
          %v667 = vadd.f32 %v665, %v666
          %v668 = vrot.slane %v655, 4
          %v669 = vadd.f32 %v655, %v668
          %v670 = vrot.slane %v669, 2
          %v671 = vadd.f32 %v669, %v670
          %v672 = vrot.slane %v671, 1
          %v673 = vadd.f32 %v671, %v672
          %v674 = vrot.slane %v656, 4
          %v675 = vadd.f32 %v656, %v674
          %v676 = vrot.slane %v675, 2
          %v677 = vadd.f32 %v675, %v676
          %v678 = vrot.slane %v677, 1
          %v679 = vadd.f32 %v677, %v678
          %v680 = vrot.slane %v657, 4
          %v681 = vadd.f32 %v657, %v680
          %v682 = vrot.slane %v681, 2
          %v683 = vadd.f32 %v681, %v682
          %v684 = vrot.slane %v683, 1
          %v685 = vadd.f32 %v683, %v684
          %v686 = vrot.slane %v658, 4
          %v687 = vadd.f32 %v658, %v686
          %v688 = vrot.slane %v687, 2
          %v689 = vadd.f32 %v687, %v688
          %v690 = vrot.slane %v689, 1
          %v691 = vadd.f32 %v689, %v690
          %v692 = vrot.slane %v659, 4
          %v693 = vadd.f32 %v659, %v692
          %v694 = vrot.slane %v693, 2
          %v695 = vadd.f32 %v693, %v694
          %v696 = vrot.slane %v695, 1
          %v697 = vadd.f32 %v695, %v696
          %v698 = vrot.slane %v660, 4
          %v699 = vadd.f32 %v660, %v698
          %v700 = vrot.slane %v699, 2
          %v701 = vadd.f32 %v699, %v700
          %v702 = vrot.slane %v701, 1
          %v703 = vadd.f32 %v701, %v702
          %v704 = vrot.slane %v661, 4
          %v705 = vadd.f32 %v661, %v704
          %v706 = vrot.slane %v705, 2
          %v707 = vadd.f32 %v705, %v706
          %v708 = vrot.slane %v707, 1
          %v709 = vadd.f32 %v707, %v708
          %v710 = vlaneseq
          %v711 = vand.u32 %v710, 127
          %v712 = vstv %s489
          %v713 = vadd.s32 %v712, %v711
          %v714 = vstv %s488
          %vm715 = vcmp.lt.s32.totalorder %v713, %v714
          %vm724 = vcmask 1041409
          %v725 = vsel %vm724, %v673, %v667
          %vm726 = vcmask 1042434
          %v727 = vsel %vm726, %v679, %v725
          %vm728 = vcmask 1043459
          %v729 = vsel %vm728, %v685, %v727
          %vm730 = vcmask 1044484
          %v731 = vsel %vm730, %v691, %v729
          %vm732 = vcmask 1045509
          %v733 = vsel %vm732, %v697, %v731
          %vm734 = vcmask 1046534
          %v735 = vsel %vm734, %v703, %v733
          %vm736 = vcmask 1047559
          %v737 = vsel %vm736, %v709, %v735
          %v739 = vsel %vm715, %v737, -1000000.0
          %v740 = vld [vmem:[#allocation3] sm:$0xff]
          %741 = vmax.xlane.f32.xlu0 %v739
          %v742 = vpop.xlane.xlu0 %741
          %v743 = vmax.f32 %v740, %v742
          %v744 = vsub.f32 %v740, %v743
          %v745 = vmul.f32 %v744, 1.442695
          %v746 = vpow.pop %v745
          %748 = vset.pattern.permute.xlu0 0
          %749 = vperm.xlu0 %748, %v743
          %v750 = vpop.permute.xlu0 %749
          %v752 = vsub.f32 %v739, %v750
          %v753 = vmul.f32 %v752, 1.442695
          %v754 = vpow.pop %v753
          %v755 = vld [vmem:[#allocation4] sm:$0xff]
          %v756 = vmul.f32 %v746, %v755
          %757 = vadd.xlane.f32.xlu0 %v754
          %v758 = vpop.xlane.xlu0 %757
          %v759 = vadd.f32 %v756, %v758
          %vm760 = vcmask 7168
          %761 = vst.msk [vmem:[#allocation4] sm:$0xff] %vm760, %v759
          %v762 = vld [vmem:[%s395] sm:$0xff]
          %764 = vset.pattern.permute.xlu0 0
          %765 = vperm.xlu0 %764, %v746
          %v766 = vpop.permute.xlu0 %765
          %v768 = vmul.f32 %v766, %v762
          %v769 = vld [vmem:[%s387] sm:$0xff]
          %v770 = vld [vmem:[%s387 + $0x8] sm:$0xff]
          %v771 = vld [vmem:[%s387 + $0x10] sm:$0xff]
          %v772 = vld [vmem:[%s387 + $0x18] sm:$0xff]
          %v773 = vld [vmem:[%s387 + $0x20] sm:$0xff]
          %v774 = vld [vmem:[%s387 + $0x28] sm:$0xff]
          %v775 = vld [vmem:[%s387 + $0x30] sm:$0xff]
          %v776 = vld [vmem:[%s387 + $0x38] sm:$0xff]
          %v777 = vld [vmem:[%s387 + $0x40] sm:$0xff]
          %v778 = vld [vmem:[%s387 + $0x48] sm:$0xff]
          %v779 = vld [vmem:[%s387 + $0x50] sm:$0xff]
          %v780 = vld [vmem:[%s387 + $0x58] sm:$0xff]
          %v781 = vld [vmem:[%s387 + $0x60] sm:$0xff]
          %v782 = vld [vmem:[%s387 + $0x68] sm:$0xff]
          %v783 = vld [vmem:[%s387 + $0x70] sm:$0xff]
          %v784 = vld [vmem:[%s387 + $0x78] sm:$0xff]
          %785 = vmatprep.subr.mxu0 0.0
          %786 = vmatpush1.msra.mxu0 %v784
          %787 = vmatprep.subr.mxu0 0.0
          %788 = vmatpush1.msra.mxu0 %v783
          %789 = vmatprep.subr.mxu0 0.0
          %790 = vmatpush1.msra.mxu0 %v782
          %791 = vmatprep.subr.mxu0 0.0
          %792 = vmatpush1.msra.mxu0 %v781
          %793 = vmatprep.subr.mxu0 0.0
          %794 = vmatpush1.msra.mxu0 %v780
          %795 = vmatprep.subr.mxu0 0.0
          %796 = vmatpush1.msra.mxu0 %v779
          %797 = vmatprep.subr.mxu0 0.0
          %798 = vmatpush1.msra.mxu0 %v778
          %799 = vmatprep.subr.mxu0 0.0
          %800 = vmatpush1.msra.mxu0 %v777
          %801 = vmatprep.subr.mxu0 0.0
          %802 = vmatpush1.msra.mxu0 %v776
          %803 = vmatprep.subr.mxu0 0.0
          %804 = vmatpush1.msra.mxu0 %v775
          %805 = vmatprep.subr.mxu0 0.0
          %806 = vmatpush1.msra.mxu0 %v774
          %807 = vmatprep.subr.mxu0 0.0
          %808 = vmatpush1.msra.mxu0 %v773
          %809 = vmatprep.subr.mxu0 0.0
          %810 = vmatpush1.msra.mxu0 %v772
          %811 = vmatprep.subr.mxu0 0.0
          %812 = vmatpush1.msra.mxu0 %v771
          %813 = vmatprep.subr.mxu0 0.0
          %814 = vmatpush1.msra.mxu0 %v770
          %815 = vmatprep.subr.mxu0 0.0
          %816 = vmatpush1.msra.mxu0 %v769
          %817 = vmatprep.subr.mxu0 0.0
          %818 = vmatpush2.msra.mxu0 0.0
          %819 = vmatprep.subr.mxu0 0.0
          %820 = vmatpush2.msra.mxu0 0.0
          %821 = vmatprep.subr.mxu0 0.0
          %822 = vmatpush2.msra.mxu0 0.0
          %823 = vmatprep.subr.mxu0 0.0
          %824 = vmatpush2.msra.mxu0 0.0
          %825 = vmatprep.subr.mxu0 0.0
          %826 = vmatpush2.msra.mxu0 0.0
          %827 = vmatprep.subr.mxu0 0.0
          %828 = vmatpush2.msra.mxu0 0.0
          %829 = vmatprep.subr.mxu0 0.0
          %830 = vmatpush2.msra.mxu0 0.0
          %831 = vmatprep.subr.mxu0 0.0
          %832 = vmatpush2.msra.mxu0 0.0
          %833 = vmatprep.subr.mxu0 0.0
          %834 = vmatpush2.msra.mxu0 0.0
          %835 = vmatprep.subr.mxu0 0.0
          %836 = vmatpush2.msra.mxu0 0.0
          %837 = vmatprep.subr.mxu0 0.0
          %838 = vmatpush2.msra.mxu0 0.0
          %839 = vmatprep.subr.mxu0 0.0
          %840 = vmatpush2.msra.mxu0 0.0
          %841 = vmatprep.subr.mxu0 0.0
          %842 = vmatpush2.msra.mxu0 0.0
          %843 = vmatprep.subr.mxu0 0.0
          %844 = vmatpush2.msra.mxu0 0.0
          %845 = vmatprep.subr.mxu0 0.0
          %846 = vmatpush2.msra.mxu0 0.0
          %847 = vmatprep.subr.mxu0 0.0
          %848 = vmatpush2.msra.mxu0 0.0
          %849 = vmatprep.mubr.f32.mxu0 0.0
          %850 = vmatmul.mubr.f32.gmra.mxu0 %v754
          %v851 = vpop.f32.mrf.mxu0
          %v852 = vadd.f32 0.0, %v851
          %v853 = vpop.f32.mrf.mxu0
          %854 = vdwg.mxu0
          %v855 = vadd.f32 %v768, %v852
          %vm856 = vcmask 31744
          %857 = vst.msk [vmem:[%s395] sm:$0xff] %vm856, %v855
          %858 = vst.msk [vmem:[#allocation3] sm:$0xff] %vm760, %v743
          %p859 = scmp.gt.s32.totalorder %s36, 0
          // Predicated region
          $region53: #{tpu_custom_call.1} parent=51 // pred_check
            %p860 = pneg %p859
          $region54: #{tpu_custom_call.1} parent=51 // pred_check_branch
            %862 = sbr.rel (%p860) target = $region56
          $region55: #{tpu_custom_call.1} parent=51 // pred_region
            %v863 = vld [vmem:[%s364] sm:$0xff]
            %v864 = vmul.f32 %v863, %v766
            %865 = vst [vmem:[%s364] sm:$0xff] %v864
          $region56: #{tpu_custom_call.1} parent=51 // pred_fallthru
            _
          %s866 = sshra.s32 %s489, 7
          %s867 = sand.u32 %s489, 127
          %s868 = scalar_lea.vmem %s364, %s866 [#allocation7]
          %869 = vst [vmem:[%s868] sm:$0xff] %v754
        $region52: #{tpu_custom_call.1} parent=43 // pred_fallthru
          _
        // Predicated region
        $region57: #{tpu_custom_call.1} parent=43 // pred_check
          %p870 = pneg %p396
        $region58: #{tpu_custom_call.1} parent=43 // pred_check_branch
          %872 = sbr.rel (%p870) target = $region60
        $region59: #{tpu_custom_call.1} parent=43 // pred_region
          %v873 = vld [vmem:[#allocation4] sm:$0xff]
          %v874 = vrcp.pop %v873
          %v875 = vld [vmem:[%s395] sm:$0xff]
          %877 = vset.pattern.permute.xlu0 0
          %878 = vperm.xlu0 %877, %v874
          %v879 = vpop.permute.xlu0 %878
          %v881 = vmul.f32 %v875, %v879
          %vm882 = vcmask 31744
          %883 = vst.msk [vmem:[%s395] sm:$0xff] %vm882, %v881
          %v884 = vld [vmem:[%s364] sm:$0xff]
          %v885 = vmul.f32 %v884, %v879
          %886 = vst [vmem:[%s364] sm:$0xff] %v885
        $region60: #{tpu_custom_call.1} parent=43 // pred_fallthru
          _
        %p887 = scmp.lt.s32.totalorder %s34, 1
        %s888 = scalar_select %p887, %s34, 1
        %p889 = scmp.lt.s32.totalorder %s35, 0
        %s890 = scalar_select %p889, %s35, 0
        %s891 = sadd.s32 %s890, %s888
        %s892 = smul.addr %s891, 8
        %s893 = scalar_lea.vmem %s7, %s892
        %s894 = sand.u32 %s233, 1
        %s895 = scalar_lea.sflag [#allocation8], %s894
        %s896 = sand.u32 %s233, 1
        %s897 = smul.addr %s896, 8
        %s898 = scalar_lea.vmem [#allocation7], %s897
        // Predicated region
        $region61: #{tpu_custom_call.1} parent=43 // pred_check
          %p899 = pneg %p215
        $region62: #{tpu_custom_call.1} parent=43 // pred_check_branch
          %901 = sbr.rel (%p899) target = $region64
        $region63: #{tpu_custom_call.1} parent=43 // pred_region
          _
        $region64: #{tpu_custom_call.1} parent=43 // pred_fallthru
          _
        // Predicated region
        $region65: #{tpu_custom_call.1} parent=43 // pred_check
          %p902 = pneg %p243
        $region66: #{tpu_custom_call.1} parent=43 // pred_check_branch
          %904 = sbr.rel (%p902) target = $region68
        $region67: #{tpu_custom_call.1} parent=43 // pred_region
          %s906 = ssub.s32 128, 128
          %907 = vsyncadd %s895, %s906
          %s908 = sadd.s32 %s35, %s34
          %s909 = smul.addr %s908, 128
          %s910 = scalar_lea.hbm %s8, %s909
          %s912 = sshll.u32 %s898, 4
          %s913 = int_to_ptr.vmem [resolvable:$true] %s912
          %915 = dma.vmem_to_hbm [thread:$0]  %s913, 128, %s910, %s895
        $region68: #{tpu_custom_call.1} parent=43 // pred_fallthru
          _
      $region44: #{tpu_custom_call.1} parent=5 // pred_fallthru
        _
      %p916 = scmp.le.s32.totalorder 2, %s24
      // Predicated region
      $region69: #{tpu_custom_call.1} parent=5 // pred_check
        %p917 = pneg %p916
      $region70: #{tpu_custom_call.1} parent=5 // pred_check_branch
        %919 = sbr.rel (%p917) target = $region72
      $region71: #{tpu_custom_call.1} parent=5 // pred_region
        %s920 = ssub.s32 %s24, 2
        // Predicated region
        $region73: #{tpu_custom_call.1} parent=71 // pred_check
          %p921 = pneg %p221
        $region74: #{tpu_custom_call.1} parent=71 // pred_check_branch
          %923 = sbr.rel (%p921) target = $region76
        $region75: #{tpu_custom_call.1} parent=71 // pred_region
          %p924 = scmp.lt.s32.totalorder %s37, 1
          %s925 = scalar_select %p924, %s37, 1
          %p926 = scmp.lt.s32.totalorder %s38, 0
          %s927 = scalar_select %p926, %s38, 0
          %s928 = sadd.s32 %s927, %s925
          %s929 = smul.addr %s928, 8
          %s930 = scalar_lea.vmem %s7, %s929
        $region76: #{tpu_custom_call.1} parent=71 // pred_fallthru
          _
        // Predicated region
        $region77: #{tpu_custom_call.1} parent=71 // pred_check
          %p931 = pneg %p249
        $region78: #{tpu_custom_call.1} parent=71 // pred_check_branch
          %933 = sbr.rel (%p931) target = $region80
        $region79: #{tpu_custom_call.1} parent=71 // pred_region
          %s934 = sand.u32 %s234, 1
          %s935 = scalar_lea.sflag [#allocation8], %s934
          %s936 = sand.u32 %s234, 1
          %s937 = smul.addr %s936, 8
          %s938 = scalar_lea.vmem [#allocation7], %s937
          %939 = dma.done %s935, 128
        $region80: #{tpu_custom_call.1} parent=71 // pred_fallthru
          _
      $region72: #{tpu_custom_call.1} parent=5 // pred_fallthru
        _
    $region6: #{tpu_custom_call.1} parent=1 // loop_footer
      %s28 = sadd.s32 1, %s24
    $region7: #{tpu_custom_call.1} parent=1 // loop_footer_branch
      %23 = sbr.rel target = $region3
    $region8: #{tpu_custom_call.1} parent=1 // loop_exit
      _
    %940 = vsyncpa [#allocation8], 1
    %s941 = scalar_lea.sflag [#allocation8], 1
    %942 = vsyncpa %s941, 1

</llo_original>
